<compile_context>
chip_gen: v5e
topology: v5e:2x2
jax: 0.10.0
libtpu: 0.0.40
codegen_flags: <defaults>
</compile_context>

<pallas_src>
import jax
import jax.numpy as jnp
from jax.experimental import pallas as pl
from jax.experimental.pallas import tpu as pltpu

_LANES = 128
# 8 MiB per block -> 32 MiB live VMEM with default double buffering (in+out),
# within v7x's 64 MiB physical VMEM and v5e/v6e's 128 MiB.
_TARGET_BLOCK_BYTES = 8 * 1024 * 1024
# Explicit scoped-VMEM budget: above v5e's 16 MiB default, below v7x physical.
_VMEM_LIMIT_BYTES = 48 * 1024 * 1024
# Below this, pallas_call launch + single-step pipeline overhead dominates;
# XLA's native metadata reshape is strictly cheaper.
_MIN_MATERIALIZE_BYTES = 1 * 1024 * 1024


def _copy_kernel(x_ref, o_ref):
    # Straight copy of the current (tile_rows, 128) tile.
    o_ref[...] = x_ref[...]


def _sublane_multiple(dtype):
    # Packed-tile sublane count: 8 for f32, 16 for bf16, 32 for int8/fp8.
    itemsize = jnp.dtype(dtype).itemsize
    return max(8, 32 // itemsize)


def _contiguous_copy_flat(x2d, target_block_bytes=_TARGET_BLOCK_BYTES):
    """Copy an (R, 128) array through a Pallas kernel with MiB-scale tiles."""
    R, C = x2d.shape
    assert C == _LANES
    itemsize = jnp.dtype(x2d.dtype).itemsize
    sub = _sublane_multiple(x2d.dtype)

    # Rows per block: target `target_block_bytes`, aligned to the packed
    # sublane count, capped at the (sublane-aligned) array extent.
    rows = target_block_bytes // (_LANES * itemsize)
    rows = max(sub, (rows // sub) * sub)
    r_aligned = ((R + sub - 1) // sub) * sub
    tile_rows = min(rows, r_aligned)

    grid = (pl.cdiv(R, tile_rows),)  # partial last block is masked by Pallas

    return pl.pallas_call(
        _copy_kernel,
        out_shape=jax.ShapeDtypeStruct((R, C), x2d.dtype),
        grid=grid,
        in_specs=[pl.BlockSpec((tile_rows, C), lambda i: (i, 0))],
        out_specs=pl.BlockSpec((tile_rows, C), lambda i: (i, 0)),
        compiler_params=pltpu.CompilerParams(
            # Independent copy tiles; keep "parallel" (near-neutral on single
            # TC chips, allows sharding where supported).
            dimension_semantics=("parallel",),
            vmem_limit_bytes=_VMEM_LIMIT_BYTES,
        ),
        cost_estimate=pl.CostEstimate(
            flops=0,
            transcendentals=0,
            bytes_accessed=2 * R * C * itemsize,
        ),
    )(x2d)


def _resolve_shape(total, shape):
    """Mimic torch.Tensor.view shape resolution (supports a single -1)."""
    shape = list(shape)
    if -1 in shape:
        idx = shape.index(-1)
        known = 1
        for i, s in enumerate(shape):
            if i != idx:
                known *= s
        assert total % known == 0, "invalid shape for view"
        shape[idx] = total // known
    prod = 1
    for s in shape:
        prod *= s
    assert prod == total, "shape mismatch in view"
    return tuple(shape)


class Reshape:
    """JAX/Pallas equivalent of the PyTorch Reshape nn.Module.

    __call__(x, materialize=None):
      materialize=None  -> auto: Pallas materializing copy only for
                           128-aligned inputs >= 1 MiB (torch .contiguous()
                           parity at scale); otherwise metadata reshape.
      materialize=True  -> force the Pallas copy (if the flat length is a
                           multiple of 128 lanes).
      materialize=False -> always metadata reshape (pure-JAX fast path).
    """

    def __init__(self, *args):
        self.shape = args

    def __call__(self, x, materialize=None):
        total = x.size
        target = _resolve_shape(total, self.shape)

        aligned = (total % _LANES == 0)
        nbytes = total * jnp.dtype(x.dtype).itemsize
        if materialize is None:
            materialize = aligned and nbytes >= _MIN_MATERIALIZE_BYTES

        if total == 0 or not aligned or not materialize:
            # Value-semantic JAX reshape: identical result, zero extra HBM
            # traffic. Ragged (non-128-multiple) totals are routed here
            # instead of the old pad + slice path (3x traffic).
            return jnp.reshape(x, target)

        copied = _contiguous_copy_flat(jnp.reshape(x, (-1, _LANES)))
        return jnp.reshape(copied, target)  # the .view(): metadata only


if __name__ == "__main__":
    key = jax.random.PRNGKey(0)
    k1, k2 = jax.random.split(key)

    # 1) Spec-shaped input (NCHW conv feature map): (2, 4, 16, 16), 8 KiB.
    #    Auto policy takes the metadata-reshape fast path.
    x = jax.random.normal(k1, (2, 4, 16, 16), dtype=jnp.float32)
    module = Reshape(2, -1)
    y_fast = jax.block_until_ready(module(x))
    y_ref = jnp.reshape(x, (2, -1))
    assert y_fast.shape == (2, 4 * 16 * 16)
    assert y_fast.dtype == x.dtype
    assert bool(jnp.all(y_fast == y_ref))

    # 2) Same input, forcing the Pallas materializing copy (.contiguous() parity).
    y_kern = jax.block_until_ready(module(x, materialize=True))
    assert y_kern.shape == (2, 4 * 16 * 16)
    assert bool(jnp.all(y_kern == y_ref))

    # 3) Multi-block grid with a masked partial tail block: (3000, 128) f32
    #    copied with a deliberately small 64 KiB block -> 24 grid steps,
    #    last block covers only 56 of 128 rows.
    x3 = jax.random.normal(k2, (3000, _LANES), dtype=jnp.float32)
    y3 = jax.block_until_ready(
        _contiguous_copy_flat(x3, target_block_bytes=64 * 1024))
    assert y3.shape == x3.shape
    assert bool(jnp.all(y3 == x3))

    # 4) Ragged total (210 elements, not a multiple of 128): routed to the
    #    jnp.reshape fast path instead of pad/slice.
    x4 = jax.random.normal(key, (2, 3, 5, 7), dtype=jnp.float32)
    y4 = jax.block_until_ready(Reshape(-1)(x4))
    assert y4.shape == (2 * 3 * 5 * 7,)
    assert bool(jnp.all(y4 == jnp.reshape(x4, (-1,))))

    print("KERNEL_OK")
</pallas_src>

<mosaic_0001>
module attributes {stable_mosaic.version = 11 : i64} {
  func.func @_copy_kernel(%arg0: i32, %arg1: memref<16x128xf32, #tpu.memory_space<vmem>>, %arg2: memref<16x128xf32, #tpu.memory_space<vmem>>) attributes {dimension_semantics = [#tpu.dimension_semantics<parallel>], iteration_bounds = array<i64: 1>, scalar_prefetch = 0 : i64, scratch_operands = 0 : i64, tpu.core_type = #tpu.core_type<tc>, window_params = [{transform_indices = @transform_0, window_bounds = array<i64: 16, 128>}, {transform_indices = @transform_1, window_bounds = array<i64: 16, 128>}]} {
    %c0 = arith.constant 0 : index
    %c0_0 = arith.constant 0 : index
    %0 = vector.load %arg1[%c0, %c0_0] : memref<16x128xf32, #tpu.memory_space<vmem>>, vector<16x128xf32>
    %c0_1 = arith.constant 0 : index
    %c0_2 = arith.constant 0 : index
    %1 = vector.load %arg2[%c0_1, %c0_2] : memref<16x128xf32, #tpu.memory_space<vmem>>, vector<16x128xf32>
    tpu.vector_store %arg2[%c0_1, %c0_2], %0 {strides = array<i32>} : memref<16x128xf32, #tpu.memory_space<vmem>>, vector<16x128xf32>,
    return
  }
  func.func @transform_0(%arg0: i32) -> (i32, i32) {
    %c0_i32 = arith.constant 0 : i32
    %c0_i32_0 = arith.constant 0 : i32
    return %arg0, %c0_i32 : i32, i32
  }
  func.func @transform_1(%arg0: i32) -> (i32, i32) {
    %c0_i32 = arith.constant 0 : i32
    %c0_i32_0 = arith.constant 0 : i32
    return %arg0, %c0_i32 : i32, i32
  }
}

</mosaic_0001>

<llo_original>
// kernel: tpu_custom_call.1
$region0: #{tpu_custom_call.1}
  #allocation0 [shape = 'u32[]', space=smem, size = 0x4, offset = 0x4, fixed_abs, tag = 'smem constant byte address 0x4 - core index']
  #allocation1 [shape = 'u32[72,128]{1,0:T(1,128)}', space=vmem, size = 0x9000, scoped, tag = 'internal scratch']
  %s0 = inlined_call_operand.hbm [shape: f32[16,128], index: 0, kind: input, shape index: {}]
  %s1 = inlined_call_operand.hbm [shape: f32[16,128], index: 1, kind: output, shape index: {}]
  %s2 = sld [smem:[#allocation0]]
  $region18: #{tpu_custom_call.1} parent=0
    _
  %s4 = ssub.s32 1, %s2
  %s5 = scalar_select 0, %s4, %s2
  $region1: #{tpu_custom_call.1} parent=0
    #allocation2 [shape = 'u8[8192]{0}', space=vmem, size = 0x2000, scoped, tag = 'input window, operand 0, single buffered']
    #allocation3 [shape = 's32[1]{0}', space=sflag, size = 0x4, scoped, tag = 'scoped memory for tpu_custom_call.1']
    #allocation4 [shape = 's32[1]{0}', space=sflag, size = 0x4, scoped, tag = 'scoped memory for tpu_custom_call.1']
    #allocation5 [shape = 'u8[8192]{0}', space=vmem, size = 0x2000, scoped, tag = 'output window, operand 0, single buffered']
    %6 = vsyncpa [#allocation3], 0
    %7 = vsyncpa [#allocation4], 0
    // Predicated region
    $region2: #{tpu_custom_call.1} parent=1 // pred_check
      _
    $region3: #{tpu_custom_call.1} parent=1 // pred_check_branch
      %9 = sbr.rel (0) target = $region5
    $region4: #{tpu_custom_call.1} parent=1 // pred_region
      %11 = vsyncadd [#allocation3], 0
      %s12 = sshll.u32 %s0, 4
      %s13 = int_to_ptr.hbm [resolvable:$true] %s12
      %s14 = sshll.u32 [#allocation2], 4
      %s15 = int_to_ptr.vmem [resolvable:$true] %s14
      %20 = dma.hbm_to_vmem [thread:$0]  %s13, 256, %s15, [#allocation3], 128, 128, 8
    $region5: #{tpu_custom_call.1} parent=1 // pred_fallthru
      _
    // Predicated region
    $region6: #{tpu_custom_call.1} parent=1 // pred_check
      _
    $region7: #{tpu_custom_call.1} parent=1 // pred_check_branch
      %22 = sbr.rel (0) target = $region9
    $region8: #{tpu_custom_call.1} parent=1 // pred_region
      %24 = dma.done [#allocation3], 256
    $region9: #{tpu_custom_call.1} parent=1 // pred_fallthru
      _
    %v25 = vld [vmem:[#allocation2] sm:$0xff]
    %v26 = vld [vmem:[#allocation2 + $0x8] sm:$0xff]
    %27 = vst [vmem:[#allocation5] sm:$0xff] %v25
    %28 = vst [vmem:[#allocation5 + $0x8] sm:$0xff] %v26
    // Predicated region
    $region10: #{tpu_custom_call.1} parent=1 // pred_check
      _
    $region11: #{tpu_custom_call.1} parent=1 // pred_check_branch
      %30 = sbr.rel (0) target = $region13
    $region12: #{tpu_custom_call.1} parent=1 // pred_region
      %32 = vsyncadd [#allocation4], 0
      %s33 = sshll.u32 [#allocation5], 4
      %s34 = int_to_ptr.vmem [resolvable:$true] %s33
      %s35 = sshll.u32 %s1, 4
      %s36 = int_to_ptr.hbm [resolvable:$true] %s35
      %41 = dma.vmem_to_hbm [thread:$0]  %s34, 256, %s36, [#allocation4], 128, 128, 8
    $region13: #{tpu_custom_call.1} parent=1 // pred_fallthru
      _
    // Predicated region
    $region14: #{tpu_custom_call.1} parent=1 // pred_check
      _
    $region15: #{tpu_custom_call.1} parent=1 // pred_check_branch
      %43 = sbr.rel (0) target = $region17
    $region16: #{tpu_custom_call.1} parent=1 // pred_region
      %45 = dma.done [#allocation4], 256
    $region17: #{tpu_custom_call.1} parent=1 // pred_fallthru
      _
    %46 = vsyncpa [#allocation3], 1
    %47 = vsyncpa [#allocation4], 1

</llo_original>
